<compile_context>
chip_gen: v7x
topology: tpu7x:2x2x1
jax: 0.10.0
libtpu: 0.0.40
codegen_flags: <defaults>
</compile_context>

<pallas_src>
import functools

import jax
import jax.numpy as jnp
from jax.experimental import pallas as pl
from jax.experimental.pallas import tpu as pltpu


# ----------------------------------------------------------------------------
# Fused Pallas kernel (all layers in one invocation)
# ----------------------------------------------------------------------------
def _fused_cnn_kernel(x_ref, *refs, B, padding, layer_meta, output_dim):
    """Fused CNN forward.

    x_ref : (C_in0, B * S0) f32 -- zero-padded input, batch folded into lanes
            (batch b occupies columns [b*S0, (b+1)*S0)).
    refs  : one (C_out, K*C_in + 1) weight||bias matrix per layer, then o_ref.
    o_ref : (C_out_last, B * output_dim).
    """
    w_refs = refs[:-1]
    o_ref = refs[-1]

    x = x_ref[...]                                       # (C_in0, B*S0)
    for li, (C_in, C_out, K, S_in, pool_k, is_last) in enumerate(layer_meta):
        N = B * S_in
        W_cols = N - K + 1                               # im2col output width
        L_conv = S_in - K + 1                            # valid conv cols / batch

        # --- Conv1d + bias + ReLU as ONE matmul (im2col along sublanes).
        rows = [x[:, dk:dk + W_cols] for dk in range(K)]
        rows.append(jnp.ones((1, W_cols), dtype=jnp.float32))   # bias row
        m2c = jnp.concatenate(rows, axis=0)              # (K*C_in + 1, W_cols)
        acc = jnp.dot(w_refs[li][...], m2c,
                      preferred_element_type=jnp.float32)        # (C_out, W_cols)
        acc = jnp.maximum(acc, 0.0)   # ReLU; Dropout(p=0.1) is identity (eval)

        if not is_last:
            # --- MaxPool1d(kernel=pool_k, stride=1) over the batch-folded row.
            #     Cross-batch boundary columns are garbage but are never read
            #     back (the repack below only takes each batch's valid window).
            L_pool = L_conv - pool_k + 1
            W_pool = W_cols - pool_k + 1
            m = acc[:, 0:W_pool]
            for dk in range(1, pool_k):
                m = jnp.maximum(m, acc[:, dk:dk + W_pool])
            # TODO(synk): pltpu.roll would move these shifts onto the XLU slot;
            # static lane slices kept for guaranteed lowering at widths < 128.

            # --- Re-pack for the next layer: per-batch valid window + new pad.
            S_next = L_pool + 2 * padding
            zpad = (jnp.zeros((C_out, padding), dtype=jnp.float32)
                    if padding > 0 else None)
            segs = []
            for b in range(B):
                seg = m[:, b * S_in:b * S_in + L_pool]
                if padding > 0:
                    segs.extend([zpad, seg, zpad])
                else:
                    segs.append(seg)
            x = jnp.concatenate(segs, axis=1)            # (C_out, B*S_next)
        else:
            # --- AdaptiveMaxPool1d(output_dim), PyTorch bin boundaries.
            cols = []
            for b in range(B):
                base = b * S_in
                for i in range(output_dim):
                    s = (i * L_conv) // output_dim
                    e = -(-((i + 1) * L_conv) // output_dim)     # ceil
                    cols.append(jnp.max(acc[:, base + s:base + e],
                                        axis=1, keepdims=True))
            o_ref[...] = jnp.concatenate(cols, axis=1).astype(o_ref.dtype)


# ----------------------------------------------------------------------------
# Parameter prep (hoisted out of the forward pass -- done once at setup)
# ----------------------------------------------------------------------------
def prepare_params(params):
    """Fold each Conv1d (w, b) into one (C_out, K*C_in + 1) matmul operand.

    Column dk*C_in + c holds w[o, c, dk]; last column holds the bias, matching
    the in-kernel im2col row order (K shifted slices stacked, then a ones row).
    """
    prepped, dims = [], []
    for w, b in params:
        C_out, C_in, K = w.shape
        w_flat = jnp.transpose(w, (0, 2, 1)).reshape(C_out, K * C_in)
        prepped.append(
            jnp.concatenate([w_flat, b.reshape(C_out, 1)], axis=1)
            .astype(jnp.float32))
        dims.append((C_out, C_in, K))
    return prepped, dims


# ----------------------------------------------------------------------------
# Wrapper (glue: reshape / initial pad / final flatten stay in plain JAX)
# ----------------------------------------------------------------------------
def cnn_forward(x, prepped, dims, kernel_sizes, output_dim, ind=None, padding=1):
    """x: (B, S, F). PyTorch does x.reshape(B, F, S) (a reshape, NOT a transpose)."""
    del ind  # unused, as in the PyTorch module
    B, s1, s2 = x.shape
    C0, L0 = s2, s1
    h = x.reshape(B, C0, L0).astype(jnp.float32)

    # One-time input prep: batch-folded, zero-padded layout (C0, B*S0).
    S0 = L0 + 2 * padding
    h = jnp.pad(h, ((0, 0), (0, 0), (padding, padding)))
    h = jnp.transpose(h, (1, 0, 2)).reshape(C0, B * S0)

    # Static per-layer metadata.
    n_layers = len(dims)
    layer_meta = []
    S_in = S0
    for i, (C_out, C_in, K) in enumerate(dims):
        is_last = i == n_layers - 1
        pool_k = kernel_sizes[i] if not is_last else 0
        layer_meta.append((C_in, C_out, K, S_in, pool_k, is_last))
        if not is_last:
            L_conv = S_in - K + 1
            L_pool = L_conv - pool_k + 1
            S_in = L_pool + 2 * padding
    C_last = dims[-1][0]

    kern = functools.partial(
        _fused_cnn_kernel, B=B, padding=padding,
        layer_meta=tuple(layer_meta), output_dim=output_dim)

    out = pl.pallas_call(
        kern,
        out_shape=jax.ShapeDtypeStruct((C_last, B * output_dim), jnp.float32),
        in_specs=[pl.BlockSpec(memory_space=pltpu.MemorySpace.VMEM)]
        * (1 + len(prepped)),
        out_specs=pl.BlockSpec(memory_space=pltpu.MemorySpace.VMEM),
    )(h, *prepped)

    # (C_last, B*out_dim) -> (B, C_last, out_dim) -> (B, C_last*out_dim) == Flatten.
    return (out.reshape(C_last, B, output_dim)
               .transpose(1, 0, 2)
               .reshape(B, C_last * output_dim))


# ----------------------------------------------------------------------------
# Plain-JAX reference (for correctness check)
# ----------------------------------------------------------------------------
def cnn_forward_ref(x, params, kernel_sizes, output_dim, padding=1):
    B, s1, s2 = x.shape
    h = x.reshape(B, s2, s1).astype(jnp.float32)
    n = len(params)
    for i, (w, b) in enumerate(params):
        C_out, C_in, K = w.shape
        hp = jnp.pad(h, ((0, 0), (0, 0), (padding, padding)))
        L_conv = hp.shape[2] - K + 1
        acc = sum(
            jnp.einsum("oc,bcl->bol", w[:, :, dk], hp[:, :, dk:dk + L_conv])
            for dk in range(K)
        ) + b[None, :, None]
        acc = jnp.maximum(acc, 0.0)
        if i < n - 1:
            pk = kernel_sizes[i]
            Lp = L_conv - pk + 1
            acc = jnp.max(
                jnp.stack([acc[:, :, dk:dk + Lp] for dk in range(pk)]), axis=0
            )
        else:
            cols = []
            for j in range(output_dim):
                s = (j * L_conv) // output_dim
                e = -(-((j + 1) * L_conv) // output_dim)
                cols.append(jnp.max(acc[:, :, s:e], axis=2, keepdims=True))
            acc = jnp.concatenate(cols, axis=2)
        h = acc
    return h.reshape(B, -1)


# ----------------------------------------------------------------------------
if __name__ == "__main__":
    # Config consistent with the module's __init__:
    #   conv_channels=[4, 8, 8], kernel_sizes=[3, 3], output_dim=4, stride=1, padding=1
    conv_channels = [4, 8, 8]
    kernel_sizes = [3, 3]
    output_dim = 4
    padding = 1

    key = jax.random.PRNGKey(0)
    # Input: (batch=2, seq=16, feat=4); forward reshapes to (2, 4, 16) for Conv1d.
    key, kx = jax.random.split(key)
    x = jax.random.normal(kx, (2, 16, 4), dtype=jnp.float32)
    ind = None  # unused by the module's forward

    # Deterministic parameter init (Conv1d weights (C_out, C_in, K) and biases).
    params = []
    for i in range(len(conv_channels) - 1):
        c_in, c_out, k = conv_channels[i], conv_channels[i + 1], kernel_sizes[i]
        key, kw, kb = jax.random.split(key, 3)
        bound = 1.0 / jnp.sqrt(c_in * k)
        w = jax.random.uniform(kw, (c_out, c_in, k), jnp.float32, -bound, bound)
        b = jax.random.uniform(kb, (c_out,), jnp.float32, -bound, bound)
        params.append((w, b))

    # Hoisted weight prep (done once at parameter setup, not per forward call).
    prepped, dims = prepare_params(params)

    # TODO(synk): Dropout(p=0.1) is treated as identity (eval mode); training-mode
    # stochastic dropout is not implemented in the kernel.
    out = cnn_forward(x, prepped, dims, kernel_sizes, output_dim, ind, padding)
    out = jax.block_until_ready(out)

    ref = cnn_forward_ref(x, params, kernel_sizes, output_dim, padding)
    assert out.shape == (2, conv_channels[-1] * output_dim), out.shape
    assert jnp.allclose(out, ref, atol=1e-5, rtol=1e-5), (
        float(jnp.max(jnp.abs(out - ref)))
    )
    print("KERNEL_OK")
</pallas_src>

<mosaic_0001>
module attributes {stable_mosaic.version = 11 : i64} {
  func.func @_fused_cnn_kernel(%arg0: memref<4x36xf32, #tpu.memory_space<vmem>>, %arg1: memref<8x13xf32, #tpu.memory_space<vmem>>, %arg2: memref<8x25xf32, #tpu.memory_space<vmem>>, %arg3: memref<8x8xf32, #tpu.memory_space<vmem>>) attributes {dimension_semantics = [], scalar_prefetch = 0 : i64, scratch_operands = 0 : i64, tpu.core_type = #tpu.core_type<tc>} {
    %c0 = arith.constant 0 : index
    %c0_0 = arith.constant 0 : index
    %0 = vector.load %arg0[%c0, %c0_0] : memref<4x36xf32, #tpu.memory_space<vmem>>, vector<4x36xf32>
    %1 = vector.extract_strided_slice %0 {offsets = [0, 0], sizes = [4, 34], strides = [1, 1]} : vector<4x36xf32> to vector<4x34xf32>
    %2 = vector.extract_strided_slice %0 {offsets = [0, 1], sizes = [4, 34], strides = [1, 1]} : vector<4x36xf32> to vector<4x34xf32>
    %3 = vector.extract_strided_slice %0 {offsets = [0, 2], sizes = [4, 34], strides = [1, 1]} : vector<4x36xf32> to vector<4x34xf32>
    %cst = arith.constant 1.000000e+00 : f32
    %4 = vector.broadcast %cst : f32 to vector<1x34xf32>
    %5 = tpu.concatenate %1, %2, %3, %4 in 0 : vector<4x34xf32>, vector<4x34xf32>, vector<4x34xf32>, vector<1x34xf32> -> vector<13x34xf32>
    %c0_1 = arith.constant 0 : index
    %c0_2 = arith.constant 0 : index
    %6 = vector.load %arg1[%c0_1, %c0_2] : memref<8x13xf32, #tpu.memory_space<vmem>>, vector<8x13xf32>
    %cst_3 = arith.constant dense<0.000000e+00> : vector<8x34xf32>
    %7 = tpu.matmul %6, %5, %cst_3 {dimension_numbers = #tpu.dot_dimension_numbers<[1], [0], [0], [1], [0, 0, 1, 1], [], []>} : vector<8x13xf32>, vector<13x34xf32>, vector<8x34xf32> -> vector<8x34xf32>
    %cst_4 = arith.constant 0.000000e+00 : f32
    %8 = vector.broadcast %cst_4 : f32 to vector<8x34xf32>
    %9 = arith.maximumf %7, %8 : vector<8x34xf32>
    %10 = vector.extract_strided_slice %9 {offsets = [0, 0], sizes = [8, 32], strides = [1, 1]} : vector<8x34xf32> to vector<8x32xf32>
    %11 = vector.extract_strided_slice %9 {offsets = [0, 1], sizes = [8, 32], strides = [1, 1]} : vector<8x34xf32> to vector<8x32xf32>
    %12 = arith.maximumf %10, %11 : vector<8x32xf32>
    %13 = vector.extract_strided_slice %9 {offsets = [0, 2], sizes = [8, 32], strides = [1, 1]} : vector<8x34xf32> to vector<8x32xf32>
    %14 = arith.maximumf %12, %13 : vector<8x32xf32>
    %cst_5 = arith.constant 0.000000e+00 : f32
    %15 = vector.broadcast %cst_5 : f32 to vector<8x1xf32>
    %16 = vector.extract_strided_slice %14 {offsets = [0, 0], sizes = [8, 14], strides = [1, 1]} : vector<8x32xf32> to vector<8x14xf32>
    %17 = vector.extract_strided_slice %14 {offsets = [0, 18], sizes = [8, 14], strides = [1, 1]} : vector<8x32xf32> to vector<8x14xf32>
    %18 = tpu.concatenate %15, %16, %15, %15, %17, %15 in 1 : vector<8x1xf32>, vector<8x14xf32>, vector<8x1xf32>, vector<8x1xf32>, vector<8x14xf32>, vector<8x1xf32> -> vector<8x32xf32>
    %19 = vector.extract_strided_slice %18 {offsets = [0, 0], sizes = [8, 30], strides = [1, 1]} : vector<8x32xf32> to vector<8x30xf32>
    %20 = vector.extract_strided_slice %18 {offsets = [0, 1], sizes = [8, 30], strides = [1, 1]} : vector<8x32xf32> to vector<8x30xf32>
    %21 = vector.extract_strided_slice %18 {offsets = [0, 2], sizes = [8, 30], strides = [1, 1]} : vector<8x32xf32> to vector<8x30xf32>
    %cst_6 = arith.constant 1.000000e+00 : f32
    %22 = vector.broadcast %cst_6 : f32 to vector<1x30xf32>
    %23 = tpu.concatenate %19, %20, %21, %22 in 0 : vector<8x30xf32>, vector<8x30xf32>, vector<8x30xf32>, vector<1x30xf32> -> vector<25x30xf32>
    %c0_7 = arith.constant 0 : index
    %c0_8 = arith.constant 0 : index
    %24 = vector.load %arg2[%c0_7, %c0_8] : memref<8x25xf32, #tpu.memory_space<vmem>>, vector<8x25xf32>
    %cst_9 = arith.constant dense<0.000000e+00> : vector<8x30xf32>
    %25 = tpu.matmul %24, %23, %cst_9 {dimension_numbers = #tpu.dot_dimension_numbers<[1], [0], [0], [1], [0, 0, 1, 1], [], []>} : vector<8x25xf32>, vector<25x30xf32>, vector<8x30xf32> -> vector<8x30xf32>
    %cst_10 = arith.constant 0.000000e+00 : f32
    %26 = vector.broadcast %cst_10 : f32 to vector<8x30xf32>
    %27 = arith.maximumf %25, %26 : vector<8x30xf32>
    %28 = vector.extract_strided_slice %27 {offsets = [0, 0], sizes = [8, 4], strides = [1, 1]} : vector<8x30xf32> to vector<8x4xf32>
    %cst_11 = arith.constant dense<0xFF800000> : vector<8xf32>
    %29 = vector.multi_reduction <maximumf>, %28, %cst_11 [1] : vector<8x4xf32> to vector<8xf32>
    %30 = vector.shape_cast %29 : vector<8xf32> to vector<8x1xf32>
    %31 = vector.extract_strided_slice %27 {offsets = [0, 3], sizes = [8, 4], strides = [1, 1]} : vector<8x30xf32> to vector<8x4xf32>
    %cst_12 = arith.constant dense<0xFF800000> : vector<8xf32>
    %32 = vector.multi_reduction <maximumf>, %31, %cst_12 [1] : vector<8x4xf32> to vector<8xf32>
    %33 = vector.shape_cast %32 : vector<8xf32> to vector<8x1xf32>
    %34 = vector.extract_strided_slice %27 {offsets = [0, 7], sizes = [8, 4], strides = [1, 1]} : vector<8x30xf32> to vector<8x4xf32>
    %cst_13 = arith.constant dense<0xFF800000> : vector<8xf32>
    %35 = vector.multi_reduction <maximumf>, %34, %cst_13 [1] : vector<8x4xf32> to vector<8xf32>
    %36 = vector.shape_cast %35 : vector<8xf32> to vector<8x1xf32>
    %37 = vector.extract_strided_slice %27 {offsets = [0, 10], sizes = [8, 4], strides = [1, 1]} : vector<8x30xf32> to vector<8x4xf32>
    %cst_14 = arith.constant dense<0xFF800000> : vector<8xf32>
    %38 = vector.multi_reduction <maximumf>, %37, %cst_14 [1] : vector<8x4xf32> to vector<8xf32>
    %39 = vector.shape_cast %38 : vector<8xf32> to vector<8x1xf32>
    %40 = vector.extract_strided_slice %27 {offsets = [0, 16], sizes = [8, 4], strides = [1, 1]} : vector<8x30xf32> to vector<8x4xf32>
    %cst_15 = arith.constant dense<0xFF800000> : vector<8xf32>
    %41 = vector.multi_reduction <maximumf>, %40, %cst_15 [1] : vector<8x4xf32> to vector<8xf32>
    %42 = vector.shape_cast %41 : vector<8xf32> to vector<8x1xf32>
    %43 = vector.extract_strided_slice %27 {offsets = [0, 19], sizes = [8, 4], strides = [1, 1]} : vector<8x30xf32> to vector<8x4xf32>
    %cst_16 = arith.constant dense<0xFF800000> : vector<8xf32>
    %44 = vector.multi_reduction <maximumf>, %43, %cst_16 [1] : vector<8x4xf32> to vector<8xf32>
    %45 = vector.shape_cast %44 : vector<8xf32> to vector<8x1xf32>
    %46 = vector.extract_strided_slice %27 {offsets = [0, 23], sizes = [8, 4], strides = [1, 1]} : vector<8x30xf32> to vector<8x4xf32>
    %cst_17 = arith.constant dense<0xFF800000> : vector<8xf32>
    %47 = vector.multi_reduction <maximumf>, %46, %cst_17 [1] : vector<8x4xf32> to vector<8xf32>
    %48 = vector.shape_cast %47 : vector<8xf32> to vector<8x1xf32>
    %49 = vector.extract_strided_slice %27 {offsets = [0, 26], sizes = [8, 4], strides = [1, 1]} : vector<8x30xf32> to vector<8x4xf32>
    %cst_18 = arith.constant dense<0xFF800000> : vector<8xf32>
    %50 = vector.multi_reduction <maximumf>, %49, %cst_18 [1] : vector<8x4xf32> to vector<8xf32>
    %51 = vector.shape_cast %50 : vector<8xf32> to vector<8x1xf32>
    %52 = tpu.concatenate %30, %33, %36, %39, %42, %45, %48, %51 in 1 : vector<8x1xf32>, vector<8x1xf32>, vector<8x1xf32>, vector<8x1xf32>, vector<8x1xf32>, vector<8x1xf32>, vector<8x1xf32>, vector<8x1xf32> -> vector<8x8xf32>
    %c0_19 = arith.constant 0 : index
    %c0_20 = arith.constant 0 : index
    %53 = vector.load %arg3[%c0_19, %c0_20] : memref<8x8xf32, #tpu.memory_space<vmem>>, vector<8x8xf32>
    tpu.vector_store %arg3[%c0_19, %c0_20], %52 {strides = array<i32>} : memref<8x8xf32, #tpu.memory_space<vmem>>, vector<8x8xf32>,
    return
  }
}

</mosaic_0001>

<llo_original>
// kernel: tpu_custom_call.1
$region0: #{tpu_custom_call.1}
  #allocation0 [shape = 'u32[]', space=smem, size = 0x4, offset = 0x4, fixed_abs, tag = 'smem constant byte address 0x4 - core index']
  #allocation1 [shape = 'u32[144,128]{1,0:T(1,128)}', space=vmem, size = 0x12000, scoped, tag = 'internal scratch']
  %s0 = inlined_call_operand.hbm [shape: f32[4,36], index: 0, kind: input, shape index: {}]
  %s1 = inlined_call_operand.hbm [shape: f32[8,13], index: 1, kind: input, shape index: {}]
  %s2 = inlined_call_operand.hbm [shape: f32[8,25], index: 2, kind: input, shape index: {}]
  %s3 = inlined_call_operand.hbm [shape: f32[8,8], index: 3, kind: output, shape index: {}]
  %s4 = sld [smem:[#allocation0]]
  $region34: #{tpu_custom_call.1} parent=0
    _
  %s6 = ssub.s32 1, %s4
  %s7 = scalar_select 0, %s6, %s4
  $region1: #{tpu_custom_call.1} parent=0
    #allocation2 [shape = 'u8[2048]{0}', space=vmem, size = 0x800, scoped, tag = 'input window, operand 0, single buffered']
    #allocation3 [shape = 's32[1]{0}', space=sflag, size = 0x4, scoped, tag = 'scoped memory for tpu_custom_call.1']
    #allocation4 [shape = 's32[1]{0}', space=sflag, size = 0x4, scoped, tag = 'scoped memory for tpu_custom_call.1']
    #allocation5 [shape = 'u8[4096]{0}', space=vmem, size = 0x1000, scoped, tag = 'input window, operand 1, single buffered']
    #allocation6 [shape = 's32[1]{0}', space=sflag, size = 0x4, scoped, tag = 'scoped memory for tpu_custom_call.1']
    #allocation7 [shape = 'u8[4096]{0}', space=vmem, size = 0x1000, scoped, tag = 'input window, operand 2, single buffered']
    #allocation8 [shape = 'u8[4096]{0}', space=vmem, size = 0x1000, scoped, tag = 'output window, operand 0, single buffered']
    %8 = vsyncpa [#allocation3], 0
    %9 = vsyncpa [#allocation6], 0
    %10 = vsyncpa [#allocation4], 0
    // Predicated region
    $region2: #{tpu_custom_call.1} parent=1 // pred_check
      _
    $region3: #{tpu_custom_call.1} parent=1 // pred_check_branch
      %12 = sbr.rel (0) target = $region5
    $region4: #{tpu_custom_call.1} parent=1 // pred_region
      %s14 = ssub.s32 64, 64
      %15 = vsyncadd [#allocation3], %s14
      %s17 = sshll.u32 [#allocation2], 4
      %s18 = int_to_ptr.vmem [resolvable:$true] %s17
      %20 = dma.hbm_to_vmem [thread:$0]  %s0, 64, %s18, [#allocation3]
    $region5: #{tpu_custom_call.1} parent=1 // pred_fallthru
      _
    // Predicated region
    $region6: #{tpu_custom_call.1} parent=1 // pred_check
      _
    $region7: #{tpu_custom_call.1} parent=1 // pred_check_branch
      %22 = sbr.rel (0) target = $region9
    $region8: #{tpu_custom_call.1} parent=1 // pred_region
      %s24 = ssub.s32 128, 128
      %25 = vsyncadd [#allocation6], %s24
      %s27 = sshll.u32 [#allocation5], 4
      %s28 = int_to_ptr.vmem [resolvable:$true] %s27
      %30 = dma.hbm_to_vmem [thread:$0]  %s1, 128, %s28, [#allocation6]
    $region9: #{tpu_custom_call.1} parent=1 // pred_fallthru
      _
    // Predicated region
    $region10: #{tpu_custom_call.1} parent=1 // pred_check
      _
    $region11: #{tpu_custom_call.1} parent=1 // pred_check_branch
      %32 = sbr.rel (0) target = $region13
    $region12: #{tpu_custom_call.1} parent=1 // pred_region
      %s34 = ssub.s32 128, 128
      %35 = vsyncadd [#allocation6], %s34
      %s37 = sshll.u32 [#allocation7], 4
      %s38 = int_to_ptr.vmem [resolvable:$true] %s37
      %40 = dma.hbm_to_vmem [thread:$0]  %s2, 128, %s38, [#allocation6]
    $region13: #{tpu_custom_call.1} parent=1 // pred_fallthru
      _
    // Predicated region
    $region14: #{tpu_custom_call.1} parent=1 // pred_check
      _
    $region15: #{tpu_custom_call.1} parent=1 // pred_check_branch
      %42 = sbr.rel (0) target = $region17
    $region16: #{tpu_custom_call.1} parent=1 // pred_region
      %43 = dma.done [#allocation3], 64
    $region17: #{tpu_custom_call.1} parent=1 // pred_fallthru
      _
    // Predicated region
    $region18: #{tpu_custom_call.1} parent=1 // pred_check
      _
    $region19: #{tpu_custom_call.1} parent=1 // pred_check_branch
      %45 = sbr.rel (0) target = $region21
    $region20: #{tpu_custom_call.1} parent=1 // pred_region
      %46 = dma.done [#allocation6], 128
    $region21: #{tpu_custom_call.1} parent=1 // pred_fallthru
      _
    // Predicated region
    $region22: #{tpu_custom_call.1} parent=1 // pred_check
      _
    $region23: #{tpu_custom_call.1} parent=1 // pred_check_branch
      %48 = sbr.rel (0) target = $region25
    $region24: #{tpu_custom_call.1} parent=1 // pred_region
      %49 = dma.done [#allocation6], 128
    $region25: #{tpu_custom_call.1} parent=1 // pred_fallthru
      _
    %v50 = vld [vmem:[#allocation2] sm:$0xf]
    %v52 = vrot.slane %v50, 4
    %53 = vrot.lane.b32.xlu0 %v52, 127
    %v54 = vpop.permute.xlu0 %53
    %56 = vrot.lane.b32.xlu0 %v50, 126
    %v57 = vpop.permute.xlu0 %56
    %vm59 = vcmask 1043456
    %v60 = vsel %vm59, %v50, %v54
    %v61 = vsel %vm59, %v57, 1.0
    %v62 = vld [vmem:[#allocation5] sm:$0xff]
    %vm63 = vcmask 105472
    %v65 = vsel %vm63, %v62, 0
    %vm67 = vcmask 1044480
    %v69 = vsel %vm67, %v61, 0
    %71 = vmatprep.subr.mxu0 0.0
    %72 = vmatpush1.msra.mxu0 %v60
    %73 = vmatprep.subr.mxu0 0.0
    %74 = vmatpush1.msra.mxu0 %v69
    %75 = vmatprep.subr.mxu0 0.0
    %76 = vmatpush1.msra.mxu0 0.0
    %77 = vmatprep.subr.mxu0 0.0
    %78 = vmatpush1.msra.mxu0 0.0
    %79 = vmatprep.subr.mxu0 0.0
    %80 = vmatpush1.msra.mxu0 0.0
    %81 = vmatprep.subr.mxu0 0.0
    %82 = vmatpush1.msra.mxu0 0.0
    %83 = vmatprep.subr.mxu0 0.0
    %84 = vmatpush1.msra.mxu0 0.0
    %85 = vmatprep.subr.mxu0 0.0
    %86 = vmatpush1.msra.mxu0 0.0
    %87 = vmatprep.subr.mxu0 0.0
    %88 = vmatpush1.msra.mxu0 0.0
    %89 = vmatprep.subr.mxu0 0.0
    %90 = vmatpush1.msra.mxu0 0.0
    %91 = vmatprep.subr.mxu0 0.0
    %92 = vmatpush1.msra.mxu0 0.0
    %93 = vmatprep.subr.mxu0 0.0
    %94 = vmatpush1.msra.mxu0 0.0
    %95 = vmatprep.subr.mxu0 0.0
    %96 = vmatpush1.msra.mxu0 0.0
    %97 = vmatprep.subr.mxu0 0.0
    %98 = vmatpush1.msra.mxu0 0.0
    %99 = vmatprep.subr.mxu0 0.0
    %100 = vmatpush1.msra.mxu0 0.0
    %101 = vmatprep.subr.mxu0 0.0
    %102 = vmatpush1.msra.mxu0 0.0
    %103 = vmatprep.subr.mxu0 0.0
    %104 = vmatpush1.msra.mxu0 0.0
    %105 = vmatprep.subr.mxu0 0.0
    %106 = vmatpush1.msra.mxu0 0.0
    %107 = vmatprep.subr.mxu0 0.0
    %108 = vmatpush1.msra.mxu0 0.0
    %109 = vmatprep.subr.mxu0 0.0
    %110 = vmatpush1.msra.mxu0 0.0
    %111 = vmatprep.subr.mxu0 0.0
    %112 = vmatpush1.msra.mxu0 0.0
    %113 = vmatprep.subr.mxu0 0.0
    %114 = vmatpush1.msra.mxu0 0.0
    %115 = vmatprep.subr.mxu0 0.0
    %116 = vmatpush1.msra.mxu0 0.0
    %117 = vmatprep.subr.mxu0 0.0
    %118 = vmatpush1.msra.mxu0 0.0
    %119 = vmatprep.subr.mxu0 0.0
    %120 = vmatpush1.msra.mxu0 0.0
    %121 = vmatprep.subr.mxu0 0.0
    %122 = vmatpush1.msra.mxu0 0.0
    %123 = vmatprep.subr.mxu0 0.0
    %124 = vmatpush1.msra.mxu0 0.0
    %125 = vmatprep.subr.mxu0 0.0
    %126 = vmatpush1.msra.mxu0 0.0
    %127 = vmatprep.subr.mxu0 0.0
    %128 = vmatpush1.msra.mxu0 0.0
    %129 = vmatprep.subr.mxu0 0.0
    %130 = vmatpush1.msra.mxu0 0.0
    %131 = vmatprep.subr.mxu0 0.0
    %132 = vmatpush1.msra.mxu0 0.0
    %133 = vmatprep.subr.mxu0 0.0
    %134 = vmatpush1.msra.mxu0 0.0
    %135 = vmatprep.mubr.f32.mxu0 0.0
    %136 = vmatmul.mubr.f32.gmra.mrb[0].mxu0 %v65
    %v137 = vpop.f32.mrb[0].mxu0
    %v138 = vadd.f32 0.0, %v137
    %v139 = vpop.f32.mrb[0].mxu0
    %140 = vdwg.mxu0
    %v141 = vmax.f32 %v138, 0.0
    %143 = vrot.lane.b32.xlu0 %v141, 127
    %v144 = vpop.permute.xlu0 %143
    %v146 = vmax.f32 %v141, %v144
    %147 = vrot.lane.b32.xlu0 %v141, 126
    %v148 = vpop.permute.xlu0 %147
    %v150 = vmax.f32 %v146, %v148
    %152 = vrot.lane.b32.xlu0 %v150, 1
    %v153 = vpop.permute.xlu0 %152
    %155 = vrot.lane.b32.xlu0 %v150, 127
    %v156 = vpop.permute.xlu0 %155
    %vm158 = vcmask 7168
    %v159 = vsel %vm158, 0.0, %v153
    %vm160 = vcmask 121856
    %v161 = vsel %vm160, %v159, 0.0
    %vm162 = vcmask 130048
    %v163 = vsel %vm162, %v161, 0.0
    %vm164 = vcmask 138240
    %v165 = vsel %vm164, %v163, %v156
    %vm166 = vcmask 252928
    %v167 = vsel %vm166, %v165, 0.0
    %169 = vrot.lane.b32.xlu0 %v167, 127
    %v170 = vpop.permute.xlu0 %169
    %172 = vrot.lane.b32.xlu0 %v167, 126
    %v173 = vpop.permute.xlu0 %172
    %v175 = vld [vmem:[#allocation7] sm:$0xff]
    %vm176 = vcmask 203776
    %v178 = vsel %vm176, %v175, 0
    %vm180 = vcmask 1040384
    %v182 = vsel %vm180, 1.0, 0
    %184 = vmatprep.subr.mxu0 0.0
    %185 = vmatpush1.msra.mxu0 %v167
    %186 = vmatprep.subr.mxu0 0.0
    %187 = vmatpush1.msra.mxu0 %v170
    %188 = vmatprep.subr.mxu0 0.0
    %189 = vmatpush1.msra.mxu0 %v173
    %190 = vmatprep.subr.mxu0 0.0
    %191 = vmatpush1.msra.mxu0 %v182
    %192 = vmatprep.subr.mxu0 0.0
    %193 = vmatpush1.msra.mxu0 0.0
    %194 = vmatprep.subr.mxu0 0.0
    %195 = vmatpush1.msra.mxu0 0.0
    %196 = vmatprep.subr.mxu0 0.0
    %197 = vmatpush1.msra.mxu0 0.0
    %198 = vmatprep.subr.mxu0 0.0
    %199 = vmatpush1.msra.mxu0 0.0
    %200 = vmatprep.subr.mxu0 0.0
    %201 = vmatpush1.msra.mxu0 0.0
    %202 = vmatprep.subr.mxu0 0.0
    %203 = vmatpush1.msra.mxu0 0.0
    %204 = vmatprep.subr.mxu0 0.0
    %205 = vmatpush1.msra.mxu0 0.0
    %206 = vmatprep.subr.mxu0 0.0
    %207 = vmatpush1.msra.mxu0 0.0
    %208 = vmatprep.subr.mxu0 0.0
    %209 = vmatpush1.msra.mxu0 0.0
    %210 = vmatprep.subr.mxu0 0.0
    %211 = vmatpush1.msra.mxu0 0.0
    %212 = vmatprep.subr.mxu0 0.0
    %213 = vmatpush1.msra.mxu0 0.0
    %214 = vmatprep.subr.mxu0 0.0
    %215 = vmatpush1.msra.mxu0 0.0
    %216 = vmatprep.subr.mxu0 0.0
    %217 = vmatpush1.msra.mxu0 0.0
    %218 = vmatprep.subr.mxu0 0.0
    %219 = vmatpush1.msra.mxu0 0.0
    %220 = vmatprep.subr.mxu0 0.0
    %221 = vmatpush1.msra.mxu0 0.0
    %222 = vmatprep.subr.mxu0 0.0
    %223 = vmatpush1.msra.mxu0 0.0
    %224 = vmatprep.subr.mxu0 0.0
    %225 = vmatpush1.msra.mxu0 0.0
    %226 = vmatprep.subr.mxu0 0.0
    %227 = vmatpush1.msra.mxu0 0.0
    %228 = vmatprep.subr.mxu0 0.0
    %229 = vmatpush1.msra.mxu0 0.0
    %230 = vmatprep.subr.mxu0 0.0
    %231 = vmatpush1.msra.mxu0 0.0
    %232 = vmatprep.subr.mxu0 0.0
    %233 = vmatpush1.msra.mxu0 0.0
    %234 = vmatprep.subr.mxu0 0.0
    %235 = vmatpush1.msra.mxu0 0.0
    %236 = vmatprep.subr.mxu0 0.0
    %237 = vmatpush1.msra.mxu0 0.0
    %238 = vmatprep.subr.mxu0 0.0
    %239 = vmatpush1.msra.mxu0 0.0
    %240 = vmatprep.subr.mxu0 0.0
    %241 = vmatpush1.msra.mxu0 0.0
    %242 = vmatprep.subr.mxu0 0.0
    %243 = vmatpush1.msra.mxu0 0.0
    %244 = vmatprep.subr.mxu0 0.0
    %245 = vmatpush1.msra.mxu0 0.0
    %246 = vmatprep.subr.mxu0 0.0
    %247 = vmatpush1.msra.mxu0 0.0
    %248 = vmatprep.mubr.f32.mxu0 0.0
    %249 = vmatmul.mubr.f32.gmra.mrb[0].mxu0 %v178
    %v250 = vpop.f32.mrb[0].mxu0
    %v251 = vadd.f32 0.0, %v250
    %v252 = vpop.f32.mrb[0].mxu0
    %253 = vdwg.mxu0
    %v254 = vmax.f32 %v251, 0.0
    %vm255 = vcmask 31744
    %v256 = vsel %vm255, %v254, -inf
    %257 = vmax.xlane.f32.xlu0 %v256
    %v258 = vpop.xlane.xlu0 %257
    %vm259 = vcmask 56344
    %v260 = vsel %vm259, %v254, -inf
    %261 = vmax.xlane.f32.xlu0 %v260
    %v262 = vpop.xlane.xlu0 %261
    %vm263 = vcmask 89144
    %v264 = vsel %vm263, %v254, -inf
    %265 = vmax.xlane.f32.xlu0 %v264
    %v266 = vpop.xlane.xlu0 %265
    %vm267 = vcmask 113744
    %v268 = vsel %vm267, %v254, -inf
    %269 = vmax.xlane.f32.xlu0 %v268
    %v270 = vpop.xlane.xlu0 %269
    %vm271 = vcmask 162944
    %v272 = vsel %vm271, %v254, -inf
    %273 = vmax.xlane.f32.xlu0 %v272
    %v274 = vpop.xlane.xlu0 %273
    %vm275 = vcmask 187544
    %v276 = vsel %vm275, %v254, -inf
    %277 = vmax.xlane.f32.xlu0 %v276
    %v278 = vpop.xlane.xlu0 %277
    %vm279 = vcmask 220344
    %v280 = vsel %vm279, %v254, -inf
    %281 = vmax.xlane.f32.xlu0 %v280
    %v282 = vpop.xlane.xlu0 %281
    %vm283 = vcmask 244944
    %v284 = vsel %vm283, %v254, -inf
    %285 = vmax.xlane.f32.xlu0 %v284
    %v286 = vpop.xlane.xlu0 %285
    %v287 = vsel %vm158, %v258, %v262
    %vm288 = vcmask 15360
    %v289 = vsel %vm288, %v287, %v266
    %vm290 = vcmask 23552
    %v291 = vsel %vm290, %v289, %v270
    %v292 = vsel %vm255, %v291, %v274
    %vm293 = vcmask 39936
    %v294 = vsel %vm293, %v292, %v278
    %vm295 = vcmask 48128
    %v296 = vsel %vm295, %v294, %v282
    %vm297 = vcmask 56320
    %v298 = vsel %vm297, %v296, %v286
    %vm299 = vcmask 64512
    %300 = vst.msk [vmem:[#allocation8] sm:$0xff] %vm299, %v298
    // Predicated region
    $region26: #{tpu_custom_call.1} parent=1 // pred_check
      _
    $region27: #{tpu_custom_call.1} parent=1 // pred_check_branch
      %302 = sbr.rel (0) target = $region29
    $region28: #{tpu_custom_call.1} parent=1 // pred_region
      %s304 = ssub.s32 128, 128
      %305 = vsyncadd [#allocation4], %s304
      %s307 = sshll.u32 [#allocation8], 4
      %s308 = int_to_ptr.vmem [resolvable:$true] %s307
      %310 = dma.vmem_to_hbm [thread:$0]  %s308, 128, %s3, [#allocation4]
    $region29: #{tpu_custom_call.1} parent=1 // pred_fallthru
      _
    // Predicated region
    $region30: #{tpu_custom_call.1} parent=1 // pred_check
      _
    $region31: #{tpu_custom_call.1} parent=1 // pred_check_branch
      %312 = sbr.rel (0) target = $region33
    $region32: #{tpu_custom_call.1} parent=1 // pred_region
      %313 = dma.done [#allocation4], 128
    $region33: #{tpu_custom_call.1} parent=1 // pred_fallthru
      _
    %314 = vsyncpa [#allocation3], 1
    %315 = vsyncpa [#allocation6], 1
    %316 = vsyncpa [#allocation4], 1

</llo_original>
